<compile_context>
chip_gen: v6e
topology: v6e:2x2x1
jax: 0.10.0
libtpu: 0.0.40
codegen_flags: <defaults>
</compile_context>

<pallas_src>
import functools

import jax
import jax.numpy as jnp
from jax.experimental import pallas as pl
from jax.experimental.pallas import tpu as pltpu

# ---- small synthetic SMPL-like sizes -------------------------------------
N_VERTS = 64                       # number of mesh vertices
N_JOINTS = 8                       # numJoints
N_BETAS = 10                       # shape PCA coefficients
N_POSE = (N_JOINTS - 1) * 9        # pose-blend-shape coefficients
PARENT = (0, 0, 0, 1, 2, 3, 4, 5)  # kinematic tree (root's parent unused)

LANE = 128


def _round_up(x, m):
    return (x + m - 1) // m * m


def _tiling(n):
    """Lane tile + padded vertex count.

    512-lane tiles give a multi-step grid at real-SMPL N (6890 -> 7168 = 14x512,
    balances v7x's two TensorCores, ~0.5 MB/step double-buffered).  Tiny models
    just pad to one 128-lane tile.  On single-TC v5e/v6e larger tiles would
    amortize step overhead further, but the per-step working set here is small
    enough that 512 already sits near the HBM roofline.
    """
    if n >= 512:
        tile = 512
    else:
        tile = _round_up(max(n, 1), LANE)
    return tile, _round_up(n, tile)


# ===========================================================================
# Fused Pallas kernel: shape+pose blend + LBS skinning (+trans folded in)
#   vp[c]  = v_template[c] + (betas||lrotmin) @ dirs[c]            (MXU)
#   t(12,T) = G_aug(12,J+1) @ W_aug(J+1,T)                          (MXU)
#   out    = t[0:3]*vp0 + t[3:6]*vp1 + t[6:9]*vp2 + t[9:12]         (VPU FMAs)
# ===========================================================================
def _smpl_kernel(coef_ref, g_ref, dirs_ref, vt_ref, w_ref, out_ref):
    # coef_ref: (1, Kpad)    bf16  betas || lrotmin, zero padded
    # g_ref:    (12, J+1)    f32   rows 3c+r hold G[j, r, c]; rows 9..11 hold
    #                              translation; augmented last column = trans
    # dirs_ref: (3, Kpad, T) bf16  shapedirs || posedirs, vertex axis on lanes
    # vt_ref:   (3, T)       f32   v_template^T
    # w_ref:    (J+1, T)     f32   skinning weights^T with appended ones row
    # out_ref:  (3, T)       f32   skinned vertices^T
    coef = coef_ref[...]                                           # (1, Kpad)

    # Per-vertex blended transform rows (+ global trans via the ones row).
    t = jnp.dot(g_ref[...], w_ref[...],
                preferred_element_type=jnp.float32)                # (12, T)

    acc = t[9:12, :]                                               # translation
    for c in range(3):
        blend = jnp.dot(coef, dirs_ref[c],
                        preferred_element_type=jnp.float32)        # (1, T)
        vp_c = vt_ref[c:c + 1, :] + blend                          # (1, T)
        acc = acc + t[3 * c:3 * (c + 1), :] * vp_c                 # (3, T) FMA

    out_ref[...] = acc                                             # one store


def _skin_call(coef, g_aug, dirs, vt_t, w_aug):
    kpad = dirs.shape[1]
    npad = dirs.shape[2]
    jp1 = w_aug.shape[0]
    tile = 128
    for t in (512, 256, 128):
        if npad % t == 0:
            tile = t
            break
    grid = (npad // tile,)
    return pl.pallas_call(
        _smpl_kernel,
        out_shape=jax.ShapeDtypeStruct((3, npad), jnp.float32),
        grid_spec=pltpu.PrefetchScalarGridSpec(
            num_scalar_prefetch=0,
            grid=grid,
            in_specs=[
                pl.BlockSpec((1, kpad), lambda i: (0, 0)),
                pl.BlockSpec((12, jp1), lambda i: (0, 0)),
                pl.BlockSpec((3, kpad, tile), lambda i: (0, 0, i)),
                pl.BlockSpec((3, tile), lambda i: (0, i)),
                pl.BlockSpec((jp1, tile), lambda i: (0, i)),
            ],
            out_specs=pl.BlockSpec((3, tile), lambda i: (0, i))),
        compiler_params=pltpu.CompilerParams(
            dimension_semantics=("parallel",),
            vmem_limit_bytes=32 * 1024 * 1024),
    )(coef, g_aug, dirs, vt_t, w_aug)


# ===========================================================================
# One-time constant preparation (hoisted out of the per-call path)
# ===========================================================================
def prepare_constants(shapedirs, posedirs, v_template, j_regressor, weights,
                      store_dtype=jnp.bfloat16):
    n, _, nb = shapedirs.shape
    npose = posedirs.shape[2]
    k = nb + npose
    kpad = _round_up(k, 16)          # clean bf16 sublane packing
    tile, npad = _tiling(n)
    del tile

    # Merged blend directions, vertex axis on lanes: (3, Kpad, Npad), bf16.
    dirs = jnp.concatenate([shapedirs, posedirs], axis=2)          # (N, 3, K)
    dirs = jnp.transpose(dirs, (1, 2, 0))                          # (3, K, N)
    dirs = jnp.pad(dirs, ((0, 0), (0, kpad - k), (0, npad - n)))
    dirs = dirs.astype(store_dtype)

    vt_t = jnp.pad(jnp.transpose(v_template),
                   ((0, 0), (0, npad - n))).astype(jnp.float32)    # (3, Npad)

    w_t = jnp.pad(jnp.transpose(weights),
                  ((0, 0), (0, npad - n))).astype(jnp.float32)     # (J, Npad)
    ones = jnp.ones((1, npad), jnp.float32)
    w_aug = jnp.concatenate([w_t, ones], axis=0)                   # (J+1, Npad)

    # Joint regression re-associated so the kernel never exports v_shaped:
    #   J = (Jreg @ shapedirs) . betas + Jreg @ v_template
    j_dirs = jnp.einsum('jn,ncb->jcb', j_regressor, shapedirs)     # (J, 3, B)
    j_template = j_regressor @ v_template                          # (J, 3)

    return dict(dirs=dirs, vt_t=vt_t, w_aug=w_aug,
                j_dirs=j_dirs, j_template=j_template)


# ===========================================================================
# Tiny O(J) per-call prologue (Rodrigues + kinematic chain on 8 joints)
# ===========================================================================
def rodrigues(r):
    """Axis-angle [J, 3] -> rotation matrices [J, 3, 3] (batched Rodrigues)."""
    # TODO(synk): torch adds N(0, 1e-8) noise to r before the norm; a
    #             deterministic epsilon is numerically equivalent.
    theta = jnp.linalg.norm(r, axis=1, keepdims=True) + 1e-8       # (J, 1)
    r_hat = r / theta                                              # (J, 3)
    cos = jnp.cos(theta)[:, :, None]
    sin = jnp.sin(theta)[:, :, None]
    z = jnp.zeros_like(r[:, 0])
    m = jnp.stack([z, -r_hat[:, 2], r_hat[:, 1],
                   r_hat[:, 2], z, -r_hat[:, 0],
                   -r_hat[:, 1], r_hat[:, 0], z], axis=1).reshape(-1, 3, 3)
    eye = jnp.eye(3, dtype=r.dtype)[None]
    outer = r_hat[:, :, None] * r_hat[:, None, :]
    return cos * eye + (1.0 - cos) * outer + sin * m


def kinematic_chain(rot, joints, parent):
    """World transforms per joint, with rest-pose joint location removed."""
    jn = rot.shape[0]
    bottom = jnp.array([[0.0, 0.0, 0.0, 1.0]], dtype=rot.dtype)
    g = [None] * jn
    g[0] = jnp.concatenate(
        [jnp.concatenate([rot[0], joints[0][:, None]], axis=1), bottom], axis=0)
    for i in range(1, jn):
        a_i = jnp.concatenate(
            [jnp.concatenate([rot[i], (joints[i] - joints[parent[i]])[:, None]],
                             axis=1), bottom], axis=0)
        g[i] = g[parent[i]] @ a_i
    stacked = jnp.stack(g, axis=0)                                 # (J, 4, 4)
    j_h = jnp.concatenate([joints, jnp.zeros((jn, 1), rot.dtype)], axis=1)
    packed = jnp.matmul(stacked, j_h[:, :, None])                  # (J, 4, 1)
    pack_mat = jnp.concatenate(
        [jnp.zeros((jn, 4, 3), rot.dtype), packed], axis=2)        # (J, 4, 4)
    return stacked - pack_mat


@functools.partial(jax.jit, static_argnames=("n_verts",))
def smpl_forward(consts, betas, pose, trans, *, n_verts):
    """Equivalent of SMPLModel.forward(betas, pose, trans) -> vertices [N, 3]."""
    dirs = consts["dirs"]
    vt_t = consts["vt_t"]
    w_aug = consts["w_aug"]
    j_dirs = consts["j_dirs"]
    j_template = consts["j_template"]
    jn = w_aug.shape[0] - 1
    kpad = dirs.shape[1]

    # Rodrigues + pose-blend coefficients (depend only on pose).
    rot = rodrigues(pose)                                              # (J, 3, 3)
    lrotmin = (rot[1:] - jnp.eye(3, dtype=rot.dtype)[None]).reshape(-1)

    # Merged blend-coefficient row (betas || lrotmin), zero padded, bf16.
    coef = jnp.concatenate([betas, lrotmin])
    coef = jnp.pad(coef, (0, kpad - coef.shape[0])).reshape(1, kpad)
    coef = coef.astype(dirs.dtype)

    # Joints regressed directly from betas (kernel never exports v_shaped).
    joints = jnp.einsum('jcb,b->jc', j_dirs, betas) + j_template       # (J, 3)
    g = kinematic_chain(rot, joints, PARENT)                           # (J, 4, 4)

    # Row layout for the kernel: rows 3c+r = G[j, r, c]; rows 9..11 = G[j, r, 3];
    # augmented column carries the global translation (applied via ones row).
    g_rot = jnp.transpose(g[:, :3, :3], (2, 1, 0)).reshape(9, jn)      # (9, J)
    g_tr = jnp.transpose(g[:, :3, 3])                                  # (3, J)
    g12 = jnp.concatenate([g_rot, g_tr], axis=0)                       # (12, J)
    aug_col = jnp.concatenate(
        [jnp.zeros((9,), g12.dtype), trans.astype(g12.dtype)])[:, None]
    g_aug = jnp.concatenate([g12, aug_col], axis=1)                    # (12, J+1)

    out_t = _skin_call(coef, g_aug, dirs, vt_t, w_aug)                 # (3, Npad)
    return out_t[:, :n_verts].T


# ===========================================================================
# Pure-JAX reference mirroring the PyTorch forward
# ===========================================================================
def smpl_forward_ref(shapedirs, posedirs, v_template, j_regressor, weights,
                     betas, pose, trans, blend_store_dtype=None):
    v_shaped_full = jnp.einsum('ncb,b->nc', shapedirs, betas) + v_template
    joints = j_regressor @ v_shaped_full
    rot = rodrigues(pose)
    lrotmin = (rot[1:] - jnp.eye(3, dtype=rot.dtype)[None]).reshape(-1)
    if blend_store_dtype is not None:
        sd = shapedirs.astype(blend_store_dtype).astype(jnp.float32)
        pd = posedirs.astype(blend_store_dtype).astype(jnp.float32)
        b = betas.astype(blend_store_dtype).astype(jnp.float32)
        lr = lrotmin.astype(blend_store_dtype).astype(jnp.float32)
    else:
        sd, pd, b, lr = shapedirs, posedirs, betas, lrotmin
    v_posed = (jnp.einsum('ncb,b->nc', sd, b) + v_template
               + jnp.einsum('ncp,p->nc', pd, lr))
    g = kinematic_chain(rot, joints, PARENT)
    t = jnp.einsum('nj,jab->nab', weights, g)
    rest_h = jnp.concatenate(
        [v_posed, jnp.ones((v_posed.shape[0], 1), v_posed.dtype)], axis=1)
    v = jnp.einsum('nab,nb->na', t, rest_h)[:, :3]
    return v + trans[None, :]


if __name__ == "__main__":
    key = jax.random.PRNGKey(0)
    ks = jax.random.split(key, 8)
    shapedirs = 0.01 * jax.random.normal(ks[0], (N_VERTS, 3, N_BETAS), jnp.float32)
    posedirs = 0.01 * jax.random.normal(ks[1], (N_VERTS, 3, N_POSE), jnp.float32)
    v_template = jax.random.normal(ks[2], (N_VERTS, 3), jnp.float32)
    j_regressor = jax.nn.softmax(
        jax.random.normal(ks[3], (N_JOINTS, N_VERTS), jnp.float32), axis=1)
    weights = jax.nn.softmax(
        jax.random.normal(ks[4], (N_VERTS, N_JOINTS), jnp.float32), axis=1)

    betas = jax.random.normal(ks[5], (N_BETAS,), jnp.float32)
    pose = 0.3 * jax.random.normal(ks[6], (N_JOINTS, 3), jnp.float32)
    trans = jax.random.normal(ks[7], (3,), jnp.float32)

    # One-time constant re-layout (hoisted out of the per-call path).
    consts = prepare_constants(shapedirs, posedirs, v_template, j_regressor,
                               weights, store_dtype=jnp.bfloat16)
    consts = jax.tree_util.tree_map(jax.block_until_ready, consts)

    verts = smpl_forward(consts, betas, pose, trans, n_verts=N_VERTS)
    verts = jax.block_until_ready(verts)
    assert verts.shape == (N_VERTS, 3)

    # Primary check: against a reference that uses the same bf16-stored blend
    # directions (isolates kernel correctness from storage quantization).
    ref_q = smpl_forward_ref(shapedirs, posedirs, v_template, j_regressor,
                             weights, betas, pose, trans,
                             blend_store_dtype=jnp.bfloat16)
    err_q = float(jnp.max(jnp.abs(verts - ref_q)))
    assert err_q < 2e-3, f"mismatch vs bf16-consistent reference: {err_q}"

    # Sanity check against the full-f32 reference (includes bf16 storage error).
    ref_f = smpl_forward_ref(shapedirs, posedirs, v_template, j_regressor,
                             weights, betas, pose, trans)
    err_f = float(jnp.max(jnp.abs(verts - ref_f)))
    assert err_f < 5e-3, f"mismatch vs f32 reference: {err_f}"

    print("KERNEL_OK")
</pallas_src>

<mosaic_0001>
module attributes {stable_mosaic.version = 11 : i64} {
  func.func @_smpl_kernel(%arg0: i32, %arg1: memref<1x80xbf16, #tpu.memory_space<vmem>>, %arg2: memref<12x9xf32, #tpu.memory_space<vmem>>, %arg3: memref<3x80x128xbf16, #tpu.memory_space<vmem>>, %arg4: memref<3x128xf32, #tpu.memory_space<vmem>>, %arg5: memref<9x128xf32, #tpu.memory_space<vmem>>, %arg6: memref<3x128xf32, #tpu.memory_space<vmem>>) attributes {dimension_semantics = [#tpu.dimension_semantics<parallel>], iteration_bounds = array<i64: 1>, scalar_prefetch = 0 : i64, scratch_operands = 0 : i64, tpu.core_type = #tpu.core_type<tc>, window_params = [{pipeline_mode = #tpu.pipeline_mode<synchronous>, transform_indices = @transform_0, window_bounds = array<i64: 1, 80>}, {pipeline_mode = #tpu.pipeline_mode<synchronous>, transform_indices = @transform_1, window_bounds = array<i64: 12, 9>}, {transform_indices = @transform_2, window_bounds = array<i64: 3, 80, 128>}, {transform_indices = @transform_3, window_bounds = array<i64: 3, 128>}, {transform_indices = @transform_4, window_bounds = array<i64: 9, 128>}, {transform_indices = @transform_5, window_bounds = array<i64: 3, 128>}]} {
    %c0 = arith.constant 0 : index
    %c0_0 = arith.constant 0 : index
    %0 = vector.load %arg1[%c0, %c0_0] : memref<1x80xbf16, #tpu.memory_space<vmem>>, vector<1x80xbf16>
    %c0_1 = arith.constant 0 : index
    %c0_2 = arith.constant 0 : index
    %1 = vector.load %arg2[%c0_1, %c0_2] : memref<12x9xf32, #tpu.memory_space<vmem>>, vector<12x9xf32>
    %c0_3 = arith.constant 0 : index
    %c0_4 = arith.constant 0 : index
    %2 = vector.load %arg5[%c0_3, %c0_4] : memref<9x128xf32, #tpu.memory_space<vmem>>, vector<9x128xf32>
    %cst = arith.constant dense<0.000000e+00> : vector<12x128xf32>
    %3 = tpu.matmul %1, %2, %cst {dimension_numbers = #tpu.dot_dimension_numbers<[1], [0], [0], [1], [0, 0, 1, 1], [], []>} : vector<12x9xf32>, vector<9x128xf32>, vector<12x128xf32> -> vector<12x128xf32>
    %4 = vector.extract_strided_slice %3 {offsets = [9, 0], sizes = [3, 128], strides = [1, 1]} : vector<12x128xf32> to vector<3x128xf32>
    %c0_5 = arith.constant 0 : index
    %c0_6 = arith.constant 0 : index
    %c0_7 = arith.constant 0 : index
    %5 = vector.load %arg3[%c0_5, %c0_6, %c0_7] : memref<3x80x128xbf16, #tpu.memory_space<vmem>>, vector<1x80x128xbf16>
    %6 = vector.shape_cast %5 : vector<1x80x128xbf16> to vector<80x128xbf16>
    %cst_8 = arith.constant dense<0.000000e+00> : vector<1x128xf32>
    %7 = tpu.matmul %0, %6, %cst_8 {dimension_numbers = #tpu.dot_dimension_numbers<[1], [0], [0], [1], [0, 0, 1, 1], [], []>} : vector<1x80xbf16>, vector<80x128xbf16>, vector<1x128xf32> -> vector<1x128xf32>
    %c0_9 = arith.constant 0 : index
    %c0_10 = arith.constant 0 : index
    %8 = vector.load %arg4[%c0_9, %c0_10] : memref<3x128xf32, #tpu.memory_space<vmem>>, vector<1x128xf32>
    %9 = arith.addf %8, %7 : vector<1x128xf32>
    %10 = vector.extract_strided_slice %3 {offsets = [0, 0], sizes = [3, 128], strides = [1, 1]} : vector<12x128xf32> to vector<3x128xf32>
    %11 = vector.broadcast %9 : vector<1x128xf32> to vector<3x128xf32>
    %12 = arith.mulf %10, %11 : vector<3x128xf32>
    %13 = arith.addf %4, %12 : vector<3x128xf32>
    %c1 = arith.constant 1 : index
    %c0_11 = arith.constant 0 : index
    %c0_12 = arith.constant 0 : index
    %14 = vector.load %arg3[%c1, %c0_11, %c0_12] : memref<3x80x128xbf16, #tpu.memory_space<vmem>>, vector<1x80x128xbf16>
    %15 = vector.shape_cast %14 : vector<1x80x128xbf16> to vector<80x128xbf16>
    %cst_13 = arith.constant dense<0.000000e+00> : vector<1x128xf32>
    %16 = tpu.matmul %0, %15, %cst_13 {dimension_numbers = #tpu.dot_dimension_numbers<[1], [0], [0], [1], [0, 0, 1, 1], [], []>} : vector<1x80xbf16>, vector<80x128xbf16>, vector<1x128xf32> -> vector<1x128xf32>
    %c1_14 = arith.constant 1 : index
    %c0_15 = arith.constant 0 : index
    %17 = vector.load %arg4[%c1_14, %c0_15] : memref<3x128xf32, #tpu.memory_space<vmem>>, vector<1x128xf32>
    %18 = arith.addf %17, %16 : vector<1x128xf32>
    %19 = vector.extract_strided_slice %3 {offsets = [3, 0], sizes = [3, 128], strides = [1, 1]} : vector<12x128xf32> to vector<3x128xf32>
    %20 = vector.broadcast %18 : vector<1x128xf32> to vector<3x128xf32>
    %21 = arith.mulf %19, %20 : vector<3x128xf32>
    %22 = arith.addf %13, %21 : vector<3x128xf32>
    %c2 = arith.constant 2 : index
    %c0_16 = arith.constant 0 : index
    %c0_17 = arith.constant 0 : index
    %23 = vector.load %arg3[%c2, %c0_16, %c0_17] : memref<3x80x128xbf16, #tpu.memory_space<vmem>>, vector<1x80x128xbf16>
    %24 = vector.shape_cast %23 : vector<1x80x128xbf16> to vector<80x128xbf16>
    %cst_18 = arith.constant dense<0.000000e+00> : vector<1x128xf32>
    %25 = tpu.matmul %0, %24, %cst_18 {dimension_numbers = #tpu.dot_dimension_numbers<[1], [0], [0], [1], [0, 0, 1, 1], [], []>} : vector<1x80xbf16>, vector<80x128xbf16>, vector<1x128xf32> -> vector<1x128xf32>
    %c2_19 = arith.constant 2 : index
    %c0_20 = arith.constant 0 : index
    %26 = vector.load %arg4[%c2_19, %c0_20] : memref<3x128xf32, #tpu.memory_space<vmem>>, vector<1x128xf32>
    %27 = arith.addf %26, %25 : vector<1x128xf32>
    %28 = vector.extract_strided_slice %3 {offsets = [6, 0], sizes = [3, 128], strides = [1, 1]} : vector<12x128xf32> to vector<3x128xf32>
    %29 = vector.broadcast %27 : vector<1x128xf32> to vector<3x128xf32>
    %30 = arith.mulf %28, %29 : vector<3x128xf32>
    %31 = arith.addf %22, %30 : vector<3x128xf32>
    %c0_21 = arith.constant 0 : index
    %c0_22 = arith.constant 0 : index
    %32 = vector.load %arg6[%c0_21, %c0_22] : memref<3x128xf32, #tpu.memory_space<vmem>>, vector<3x128xf32>
    tpu.vector_store %arg6[%c0_21, %c0_22], %31 {strides = array<i32>} : memref<3x128xf32, #tpu.memory_space<vmem>>, vector<3x128xf32>,
    return
  }
  func.func @transform_0(%arg0: i32) -> (i32, i32) {
    %c0_i32 = arith.constant 0 : i32
    %c0_i32_0 = arith.constant 0 : i32
    %c0_i32_1 = arith.constant 0 : i32
    return %c0_i32, %c0_i32_0 : i32, i32
  }
  func.func @transform_1(%arg0: i32) -> (i32, i32) {
    %c0_i32 = arith.constant 0 : i32
    %c0_i32_0 = arith.constant 0 : i32
    %c0_i32_1 = arith.constant 0 : i32
    return %c0_i32, %c0_i32_0 : i32, i32
  }
  func.func @transform_2(%arg0: i32) -> (i32, i32, i32) {
    %c0_i32 = arith.constant 0 : i32
    %c0_i32_0 = arith.constant 0 : i32
    %c0_i32_1 = arith.constant 0 : i32
    return %c0_i32, %c0_i32_0, %arg0 : i32, i32, i32
  }
  func.func @transform_3(%arg0: i32) -> (i32, i32) {
    %c0_i32 = arith.constant 0 : i32
    %c0_i32_0 = arith.constant 0 : i32
    return %c0_i32, %arg0 : i32, i32
  }
  func.func @transform_4(%arg0: i32) -> (i32, i32) {
    %c0_i32 = arith.constant 0 : i32
    %c0_i32_0 = arith.constant 0 : i32
    return %c0_i32, %arg0 : i32, i32
  }
  func.func @transform_5(%arg0: i32) -> (i32, i32) {
    %c0_i32 = arith.constant 0 : i32
    %c0_i32_0 = arith.constant 0 : i32
    return %c0_i32, %arg0 : i32, i32
  }
}

</mosaic_0001>

<llo_original>
// kernel: smpl_forward.1
$region0: #{smpl_forward.1}
  #allocation0 [shape = 'u32[]', space=smem, size = 0x4, offset = 0x4, fixed_abs, tag = 'smem constant byte address 0x4 - core index']
  #allocation1 [shape = 'u32[144,128]{1,0:T(1,128)}', space=vmem, size = 0x12000, scoped, tag = 'internal scratch']
  %s0 = inlined_call_operand.vmem [shape: bf16[1,80], index: 0, kind: input, shape index: {}]
  %s1 = inlined_call_operand.vmem [shape: f32[12,9], index: 1, kind: input, shape index: {}]
  %s2 = inlined_call_operand.vmem [shape: bf16[3,80,128], index: 2, kind: input, shape index: {}]
  %s3 = inlined_call_operand.vmem [shape: f32[3,128], index: 3, kind: input, shape index: {}]
  %s4 = inlined_call_operand.vmem [shape: f32[9,128], index: 4, kind: input, shape index: {}]
  %s5 = inlined_call_operand.vmem [shape: f32[3,128], index: 5, kind: output, shape index: {}]
  %s6 = sld [smem:[#allocation0]]
  $region30: #{smpl_forward.1} parent=0
    _
  %s8 = ssub.s32 1, %s6
  %s9 = scalar_select 0, %s8, %s6
  // Predicated region
  $region2: #{smpl_forward.1} parent=0 // pred_check
    _
  $region3: #{smpl_forward.1} parent=0 // pred_check_branch
    %11 = sbr.rel (0) target = $region5
  $region4: #{smpl_forward.1} parent=0 // pred_region
    _
  $region5: #{smpl_forward.1} parent=0 // pred_fallthru
    _
  // Predicated region
  $region6: #{smpl_forward.1} parent=0 // pred_check
    _
  $region7: #{smpl_forward.1} parent=0 // pred_check_branch
    %13 = sbr.rel (0) target = $region9
  $region8: #{smpl_forward.1} parent=0 // pred_region
    _
  $region9: #{smpl_forward.1} parent=0 // pred_fallthru
    _
  // Predicated region
  $region10: #{smpl_forward.1} parent=0 // pred_check
    _
  $region11: #{smpl_forward.1} parent=0 // pred_check_branch
    %15 = sbr.rel (0) target = $region13
  $region12: #{smpl_forward.1} parent=0 // pred_region
    _
  $region13: #{smpl_forward.1} parent=0 // pred_fallthru
    _
  // Predicated region
  $region14: #{smpl_forward.1} parent=0 // pred_check
    _
  $region15: #{smpl_forward.1} parent=0 // pred_check_branch
    %17 = sbr.rel (0) target = $region17
  $region16: #{smpl_forward.1} parent=0 // pred_region
    _
  $region17: #{smpl_forward.1} parent=0 // pred_fallthru
    _
  // Predicated region
  $region18: #{smpl_forward.1} parent=0 // pred_check
    _
  $region19: #{smpl_forward.1} parent=0 // pred_check_branch
    %19 = sbr.rel (0) target = $region21
  $region20: #{smpl_forward.1} parent=0 // pred_region
    _
  $region21: #{smpl_forward.1} parent=0 // pred_fallthru
    _
  %v21 = vld [vmem:[%s0] sm:$0x1]
  %v22 = vld [vmem:[%s1] sm:$0xff]
  %v23 = vld [vmem:[%s1 + $0x8] sm:$0xf]
  %v24 = vld [vmem:[%s4] sm:$0xff]
  %v25 = vld [vmem:[%s4 + $0x8] sm:$0x1]
  %vm26 = vcmask 72704
  %v28 = vsel %vm26, %v22, 0
  %v31 = vsel %vm26, %v23, 0
  %vm33 = vcmask 1040384
  %v35 = vsel %vm33, %v25, 0
  %37 = vmatprep.subr.mxu0 0.0
  %38 = vmatpush1.msra.mxu0 0.0
  %39 = vmatprep.subr.mxu0 0.0
  %40 = vmatpush1.msra.mxu0 0.0
  %41 = vmatprep.subr.mxu0 0.0
  %42 = vmatpush1.msra.mxu0 0.0
  %43 = vmatprep.subr.mxu0 0.0
  %44 = vmatpush1.msra.mxu0 0.0
  %45 = vmatprep.subr.mxu0 0.0
  %46 = vmatpush1.msra.mxu0 0.0
  %47 = vmatprep.subr.mxu0 0.0
  %48 = vmatpush1.msra.mxu0 0.0
  %49 = vmatprep.subr.mxu0 0.0
  %50 = vmatpush1.msra.mxu0 0.0
  %51 = vmatprep.subr.mxu0 0.0
  %52 = vmatpush1.msra.mxu0 0.0
  %53 = vmatprep.subr.mxu0 0.0
  %54 = vmatpush1.msra.mxu0 0.0
  %55 = vmatprep.subr.mxu0 0.0
  %56 = vmatpush1.msra.mxu0 0.0
  %57 = vmatprep.subr.mxu0 0.0
  %58 = vmatpush1.msra.mxu0 0.0
  %59 = vmatprep.subr.mxu0 0.0
  %60 = vmatpush1.msra.mxu0 0.0
  %61 = vmatprep.subr.mxu0 0.0
  %62 = vmatpush1.msra.mxu0 0.0
  %63 = vmatprep.subr.mxu0 0.0
  %64 = vmatpush1.msra.mxu0 0.0
  %65 = vmatprep.subr.mxu0 0.0
  %66 = vmatpush1.msra.mxu0 %v35
  %67 = vmatprep.subr.mxu0 0.0
  %68 = vmatpush1.msra.mxu0 %v24
  %69 = vmatprep.subr.mxu0 0.0
  %70 = vmatpush2.msra.mxu0 0.0
  %71 = vmatprep.subr.mxu0 0.0
  %72 = vmatpush2.msra.mxu0 0.0
  %73 = vmatprep.subr.mxu0 0.0
  %74 = vmatpush2.msra.mxu0 0.0
  %75 = vmatprep.subr.mxu0 0.0
  %76 = vmatpush2.msra.mxu0 0.0
  %77 = vmatprep.subr.mxu0 0.0
  %78 = vmatpush2.msra.mxu0 0.0
  %79 = vmatprep.subr.mxu0 0.0
  %80 = vmatpush2.msra.mxu0 0.0
  %81 = vmatprep.subr.mxu0 0.0
  %82 = vmatpush2.msra.mxu0 0.0
  %83 = vmatprep.subr.mxu0 0.0
  %84 = vmatpush2.msra.mxu0 0.0
  %85 = vmatprep.subr.mxu0 0.0
  %86 = vmatpush2.msra.mxu0 0.0
  %87 = vmatprep.subr.mxu0 0.0
  %88 = vmatpush2.msra.mxu0 0.0
  %89 = vmatprep.subr.mxu0 0.0
  %90 = vmatpush2.msra.mxu0 0.0
  %91 = vmatprep.subr.mxu0 0.0
  %92 = vmatpush2.msra.mxu0 0.0
  %93 = vmatprep.subr.mxu0 0.0
  %94 = vmatpush2.msra.mxu0 0.0
  %95 = vmatprep.subr.mxu0 0.0
  %96 = vmatpush2.msra.mxu0 0.0
  %97 = vmatprep.subr.mxu0 0.0
  %98 = vmatpush2.msra.mxu0 0.0
  %99 = vmatprep.subr.mxu0 0.0
  %100 = vmatpush2.msra.mxu0 0.0
  %101 = vmatprep.mubr.f32.mxu0 0.0
  %102 = vmatmul.mubr.f32.gmra.mxu0 %v28
  %v103 = vpop.f32.mrf.mxu0
  %v104 = vadd.f32 0.0, %v103
  %v105 = vpop.f32.mrf.mxu0
  %106 = vmatprep.mubr.f32.mxu0 0.0
  %107 = vmatmul.mubr.f32.gmra.mxu0 %v31
  %v108 = vpop.f32.mrf.mxu0
  %v109 = vadd.f32 0.0, %v108
  %v110 = vpop.f32.mrf.mxu0
  %111 = vdwg.mxu0
  %v112 = vld [vmem:[%s2] sm:$0xf]
  %v113 = vld [vmem:[%s2 + $0x4] sm:$0xf]
  %v114 = vld [vmem:[%s2 + $0x8] sm:$0xf]
  %v115 = vld [vmem:[%s2 + $0xc] sm:$0xf]
  %v116 = vld [vmem:[%s2 + $0x10] sm:$0xf]
  %v117 = vld [vmem:[%s2 + $0x14] sm:$0xf]
  %v118 = vld [vmem:[%s2 + $0x18] sm:$0xf]
  %v119 = vld [vmem:[%s2 + $0x1c] sm:$0xf]
  %v120 = vld [vmem:[%s2 + $0x20] sm:$0xf]
  %v121 = vld [vmem:[%s2 + $0x24] sm:$0xf]
  %v132 = vunpack.c.l.b16 %v112
  %v133 = vunpack.c.l.b16 %v113
  %v134 = vunpack.c.l.b16 %v114
  %v135 = vunpack.c.l.b16 %v115
  %v136 = vunpack.c.l.b16 %v116
  %v137 = vunpack.c.l.b16 %v117
  %v138 = vunpack.c.l.b16 %v118
  %v139 = vunpack.c.l.b16 %v119
  %v140 = vunpack.c.l.b16 %v120
  %v141 = vunpack.c.l.b16 %v121
  %v142 = vpack.c.b16 %v133, %v132
  %v143 = vpack.c.b16 %v135, %v134
  %v144 = vpack.c.b16 %v137, %v136
  %v145 = vpack.c.b16 %v139, %v138
  %v146 = vpack.c.b16 %v141, %v140
  %vm152 = vcmask 654336
  %v154 = vsel %vm152, %v21, 0
  %156 = vmatprep.subr.bf16.mxu0 0
  %157 = vmatpush1.bf16.msra.mxu0 0
  %158 = vmatprep.subr.bf16.mxu0 0
  %159 = vmatpush1.bf16.msra.mxu0 0
  %160 = vmatprep.subr.bf16.mxu0 0
  %161 = vmatpush1.bf16.msra.mxu0 0
  %162 = vmatprep.subr.bf16.mxu0 0
  %163 = vmatpush1.bf16.msra.mxu0 %v146
  %164 = vmatprep.subr.bf16.mxu0 0
  %165 = vmatpush1.bf16.msra.mxu0 %v145
  %166 = vmatprep.subr.bf16.mxu0 0
  %167 = vmatpush1.bf16.msra.mxu0 %v144
  %168 = vmatprep.subr.bf16.mxu0 0
  %169 = vmatpush1.bf16.msra.mxu0 %v143
  %170 = vmatprep.subr.bf16.mxu0 0
  %171 = vmatpush1.bf16.msra.mxu0 %v142
  %172 = vmatprep.subr.bf16.mxu0 0
  %173 = vmatpush2.bf16.msra.mxu0 0
  %174 = vmatprep.subr.bf16.mxu0 0
  %175 = vmatpush2.bf16.msra.mxu0 0
  %176 = vmatprep.subr.bf16.mxu0 0
  %177 = vmatpush2.bf16.msra.mxu0 0
  %178 = vmatprep.subr.bf16.mxu0 0
  %179 = vmatpush2.bf16.msra.mxu0 0
  %180 = vmatprep.subr.bf16.mxu0 0
  %181 = vmatpush2.bf16.msra.mxu0 0
  %182 = vmatprep.subr.bf16.mxu0 0
  %183 = vmatpush2.bf16.msra.mxu0 0
  %184 = vmatprep.subr.bf16.mxu0 0
  %185 = vmatpush2.bf16.msra.mxu0 0
  %186 = vmatprep.subr.bf16.mxu0 0
  %187 = vmatpush2.bf16.msra.mxu0 0
  %188 = vmatprep.mubr.bf16.mxu0 0
  %189 = vmatmul.mubr.bf16.gmra.mxu0 %v154
  %v190 = vpop.f32.mrf.mxu0
  %v191 = vadd.f32 0.0, %v190
  %v192 = vpop.f32.mrf.mxu0
  %v193 = vpop.f32.mrf.mxu0
  %v194 = vpop.f32.mrf.mxu0
  %195 = vdwg.mxu0
  %v196 = vld [vmem:[%s3] sm:$0x1]
  %v197 = vadd.f32 %v196, %v191
  %v198 = vlaneseq
  %v199 = vshrl.u32 %v198, 7
  %v200 = vsub.s32 0, %v199
  %v201 = vrot.slane %v197, %v200
  %v202 = vmul.f32 %v104, %v201
  %v204 = vrot.slane %v202, 7
  %v206 = vadd.f32 %v109, %v204
  %s207 = scalar_lea.vmem %s2, 40
  %v208 = vld [vmem:[%s207] sm:$0xf]
  %v209 = vld [vmem:[%s207 + $0x4] sm:$0xf]
  %v210 = vld [vmem:[%s207 + $0x8] sm:$0xf]
  %v211 = vld [vmem:[%s207 + $0xc] sm:$0xf]
  %v212 = vld [vmem:[%s207 + $0x10] sm:$0xf]
  %v213 = vld [vmem:[%s207 + $0x14] sm:$0xf]
  %v214 = vld [vmem:[%s207 + $0x18] sm:$0xf]
  %v215 = vld [vmem:[%s207 + $0x1c] sm:$0xf]
  %v216 = vld [vmem:[%s207 + $0x20] sm:$0xf]
  %v217 = vld [vmem:[%s207 + $0x24] sm:$0xf]
  %v228 = vunpack.c.l.b16 %v208
  %v229 = vunpack.c.l.b16 %v209
  %v230 = vunpack.c.l.b16 %v210
  %v231 = vunpack.c.l.b16 %v211
  %v232 = vunpack.c.l.b16 %v212
  %v233 = vunpack.c.l.b16 %v213
  %v234 = vunpack.c.l.b16 %v214
  %v235 = vunpack.c.l.b16 %v215
  %v236 = vunpack.c.l.b16 %v216
  %v237 = vunpack.c.l.b16 %v217
  %v238 = vpack.c.b16 %v229, %v228
  %v239 = vpack.c.b16 %v231, %v230
  %v240 = vpack.c.b16 %v233, %v232
  %v241 = vpack.c.b16 %v235, %v234
  %v242 = vpack.c.b16 %v237, %v236
  %248 = vmatprep.subr.bf16.mxu0 0
  %249 = vmatpush1.bf16.msra.mxu0 0
  %250 = vmatprep.subr.bf16.mxu0 0
  %251 = vmatpush1.bf16.msra.mxu0 0
  %252 = vmatprep.subr.bf16.mxu0 0
  %253 = vmatpush1.bf16.msra.mxu0 0
  %254 = vmatprep.subr.bf16.mxu0 0
  %255 = vmatpush1.bf16.msra.mxu0 %v242
  %256 = vmatprep.subr.bf16.mxu0 0
  %257 = vmatpush1.bf16.msra.mxu0 %v241
  %258 = vmatprep.subr.bf16.mxu0 0
  %259 = vmatpush1.bf16.msra.mxu0 %v240
  %260 = vmatprep.subr.bf16.mxu0 0
  %261 = vmatpush1.bf16.msra.mxu0 %v239
  %262 = vmatprep.subr.bf16.mxu0 0
  %263 = vmatpush1.bf16.msra.mxu0 %v238
  %264 = vmatprep.subr.bf16.mxu0 0
  %265 = vmatpush2.bf16.msra.mxu0 0
  %266 = vmatprep.subr.bf16.mxu0 0
  %267 = vmatpush2.bf16.msra.mxu0 0
  %268 = vmatprep.subr.bf16.mxu0 0
  %269 = vmatpush2.bf16.msra.mxu0 0
  %270 = vmatprep.subr.bf16.mxu0 0
  %271 = vmatpush2.bf16.msra.mxu0 0
  %272 = vmatprep.subr.bf16.mxu0 0
  %273 = vmatpush2.bf16.msra.mxu0 0
  %274 = vmatprep.subr.bf16.mxu0 0
  %275 = vmatpush2.bf16.msra.mxu0 0
  %276 = vmatprep.subr.bf16.mxu0 0
  %277 = vmatpush2.bf16.msra.mxu0 0
  %278 = vmatprep.subr.bf16.mxu0 0
  %279 = vmatpush2.bf16.msra.mxu0 0
  %280 = vmatprep.mubr.bf16.mxu0 0
  %281 = vmatmul.mubr.bf16.gmra.mxu0 %v154
  %v282 = vpop.f32.mrf.mxu0
  %v283 = vadd.f32 0.0, %v282
  %v284 = vpop.f32.mrf.mxu0
  %v285 = vpop.f32.mrf.mxu0
  %v286 = vpop.f32.mrf.mxu0
  %287 = vdwg.mxu0
  %v288 = vld [vmem:[%s3 + $0x1] sm:$0x1]
  %v289 = vadd.f32 %v288, %v283
  %v290 = vlaneseq
  %v291 = vshrl.u32 %v290, 7
  %v292 = vsub.s32 0, %v291
  %v293 = vrot.slane %v289, %v292
  %v294 = vmul.f32 %v104, %v293
  %v296 = vrot.slane %v294, 2
  %v298 = vadd.f32 %v206, %v296
  %s299 = scalar_lea.vmem %s2, 80
  %v300 = vld [vmem:[%s299] sm:$0xf]
  %v301 = vld [vmem:[%s299 + $0x4] sm:$0xf]
  %v302 = vld [vmem:[%s299 + $0x8] sm:$0xf]
  %v303 = vld [vmem:[%s299 + $0xc] sm:$0xf]
  %v304 = vld [vmem:[%s299 + $0x10] sm:$0xf]
  %v305 = vld [vmem:[%s299 + $0x14] sm:$0xf]
  %v306 = vld [vmem:[%s299 + $0x18] sm:$0xf]
  %v307 = vld [vmem:[%s299 + $0x1c] sm:$0xf]
  %v308 = vld [vmem:[%s299 + $0x20] sm:$0xf]
  %v309 = vld [vmem:[%s299 + $0x24] sm:$0xf]
  %v320 = vunpack.c.l.b16 %v300
  %v321 = vunpack.c.l.b16 %v301
  %v322 = vunpack.c.l.b16 %v302
  %v323 = vunpack.c.l.b16 %v303
  %v324 = vunpack.c.l.b16 %v304
  %v325 = vunpack.c.l.b16 %v305
  %v326 = vunpack.c.l.b16 %v306
  %v327 = vunpack.c.l.b16 %v307
  %v328 = vunpack.c.l.b16 %v308
  %v329 = vunpack.c.l.b16 %v309
  %v330 = vpack.c.b16 %v321, %v320
  %v331 = vpack.c.b16 %v323, %v322
  %v332 = vpack.c.b16 %v325, %v324
  %v333 = vpack.c.b16 %v327, %v326
  %v334 = vpack.c.b16 %v329, %v328
  %340 = vmatprep.subr.bf16.mxu0 0
  %341 = vmatpush1.bf16.msra.mxu0 0
  %342 = vmatprep.subr.bf16.mxu0 0
  %343 = vmatpush1.bf16.msra.mxu0 0
  %344 = vmatprep.subr.bf16.mxu0 0
  %345 = vmatpush1.bf16.msra.mxu0 0
  %346 = vmatprep.subr.bf16.mxu0 0
  %347 = vmatpush1.bf16.msra.mxu0 %v334
  %348 = vmatprep.subr.bf16.mxu0 0
  %349 = vmatpush1.bf16.msra.mxu0 %v333
  %350 = vmatprep.subr.bf16.mxu0 0
  %351 = vmatpush1.bf16.msra.mxu0 %v332
  %352 = vmatprep.subr.bf16.mxu0 0
  %353 = vmatpush1.bf16.msra.mxu0 %v331
  %354 = vmatprep.subr.bf16.mxu0 0
  %355 = vmatpush1.bf16.msra.mxu0 %v330
  %356 = vmatprep.subr.bf16.mxu0 0
  %357 = vmatpush2.bf16.msra.mxu0 0
  %358 = vmatprep.subr.bf16.mxu0 0
  %359 = vmatpush2.bf16.msra.mxu0 0
  %360 = vmatprep.subr.bf16.mxu0 0
  %361 = vmatpush2.bf16.msra.mxu0 0
  %362 = vmatprep.subr.bf16.mxu0 0
  %363 = vmatpush2.bf16.msra.mxu0 0
  %364 = vmatprep.subr.bf16.mxu0 0
  %365 = vmatpush2.bf16.msra.mxu0 0
  %366 = vmatprep.subr.bf16.mxu0 0
  %367 = vmatpush2.bf16.msra.mxu0 0
  %368 = vmatprep.subr.bf16.mxu0 0
  %369 = vmatpush2.bf16.msra.mxu0 0
  %370 = vmatprep.subr.bf16.mxu0 0
  %371 = vmatpush2.bf16.msra.mxu0 0
  %372 = vmatprep.mubr.bf16.mxu0 0
  %373 = vmatmul.mubr.bf16.gmra.mxu0 %v154
  %v374 = vpop.f32.mrf.mxu0
  %v375 = vadd.f32 0.0, %v374
  %v376 = vpop.f32.mrf.mxu0
  %v377 = vpop.f32.mrf.mxu0
  %v378 = vpop.f32.mrf.mxu0
  %379 = vdwg.mxu0
  %v380 = vld [vmem:[%s3 + $0x2] sm:$0x1]
  %v381 = vadd.f32 %v380, %v375
  %v382 = vlaneseq
  %v383 = vshrl.u32 %v382, 7
  %v384 = vsub.s32 0, %v383
  %v385 = vrot.slane %v381, %v384
  %v386 = vmul.f32 %v104, %v385
  %v387 = vmul.f32 %v109, %v385
  %vm390 = vcmask 1042432
  %v391 = vrot.slane %v386, 5
  %v392 = vrot.slane %v387, 5
  %v393 = vsel %vm390, %v391, %v392
  %v395 = vadd.f32 %v298, %v393
  %396 = vst [vmem:[%s5 - $0x1] sm:$0xe] %v395
  // Predicated region
  $region22: #{smpl_forward.1} parent=0 // pred_check
    _
  $region23: #{smpl_forward.1} parent=0 // pred_check_branch
    %398 = sbr.rel (0) target = $region25
  $region24: #{smpl_forward.1} parent=0 // pred_region
    _
  $region25: #{smpl_forward.1} parent=0 // pred_fallthru
    _
  // Predicated region
  $region26: #{smpl_forward.1} parent=0 // pred_check
    _
  $region27: #{smpl_forward.1} parent=0 // pred_check_branch
    %400 = sbr.rel (0) target = $region29
  $region28: #{smpl_forward.1} parent=0 // pred_region
    _
  $region29: #{smpl_forward.1} parent=0 // pred_fallthru
    _

</llo_original>
